<compile_context>
chip_gen: v7x
topology: tpu7x:2x2x1
jax: 0.10.0
libtpu: 0.0.40
codegen_flags: <defaults>
</compile_context>

<pallas_src>
import functools

import jax
import jax.numpy as jnp
from jax.experimental import pallas as pl
from jax.experimental.pallas import tpu as pltpu

_LANE = 128      # last-dim (lane) granularity
_SUBLANE = 8     # second-to-last (sublane) granularity


def _round_up(x, m):
    return (x + m - 1) // m * m


def _pad2(a, rows, cols):
    """Zero-pad a 2-D array up to (rows, cols)."""
    r, c = a.shape
    if r == rows and c == cols:
        return a
    return jnp.pad(a, ((0, rows - r), (0, cols - c)))


def _vmem_budget_bytes():
    """Generation-aware VMEM budget (leave ~25% headroom); conservative fallback."""
    cap = None
    try:
        info = pltpu.get_tpu_info()
        cap = getattr(info, "vmem_capacity_bytes", None)
    except Exception:
        cap = None
    if not cap:
        cap = 64 * 1024 * 1024  # conservative: v7x per-TC VMEM
    return int(cap * 3 // 4)


_VMEM_BUDGET = _vmem_budget_bytes()


def _mlp_kernel(x_ref, w1_ref, b1_ref, w2_ref, b2_ref, out_ref):
    # fc1 + ReLU (MXU matmul, f32 accumulation)
    h = jnp.dot(x_ref[...], w1_ref[...], preferred_element_type=jnp.float32)
    h = jnp.maximum(h + b1_ref[...], 0.0)          # b1 (1, Pp) broadcasts over rows
    # fc2
    o = jnp.dot(h.astype(w2_ref.dtype), w2_ref[...],
                preferred_element_type=jnp.float32)
    o = o + b2_ref[...]                            # b2 (1, n_in) broadcasts over rows
    # NOTE: the torch module also computes softmax(dataV, dim=0) into `y`, but `y`
    # is unused and dataV is returned, so the softmax is intentionally omitted.
    out_ref[...] = o.astype(out_ref.dtype)


def prepare_params(w1, b1, w2, b2):
    """One-time (hoisted) padding of the hidden dim to a lane multiple.

    w1: [n_in, n_perc], b1: [n_perc] or [1, n_perc],
    w2: [n_perc, n_in], b2: [n_in]  or [1, n_in].
    Zero padding of the hidden dim is exact: padded hidden lanes are
    relu(0 + 0) = 0 and the corresponding w2 rows are 0.
    """
    n_in, n_perc = w1.shape
    n_perc_p = _round_up(n_perc, _LANE)
    w1p = _pad2(w1, n_in, n_perc_p)
    b1p = _pad2(jnp.reshape(b1, (1, -1)), 1, n_perc_p)
    w2p = _pad2(w2, n_perc_p, n_in)
    b2p = jnp.reshape(b2, (1, -1))
    return w1p, b1p, w2p, b2p


@functools.partial(jax.jit, static_argnames=("block_b", "force_grid"))
def net_forward(x, w1p, b1p, w2p, b2p, *, block_b=2048, force_grid=False):
    """x: [B, n_in]; params pre-padded by prepare_params; returns dataV [B, n_in]."""
    B, n_in = x.shape
    n_perc_p = w1p.shape[1]
    itemsize = jnp.dtype(x.dtype).itemsize

    # Batch padded only to the sublane granularity (8), never to a whole tile.
    b_pad = _round_up(B, _SUBLANE)
    xp = x if b_pad == B else jnp.pad(x, ((0, b_pad - B), (0, 0)))

    # VMEM needed for the single-shot (no-grid) path: x + out + f32 hidden + weights.
    single_bytes = (2 * b_pad * n_in * itemsize          # x + out
                    + b_pad * n_perc_p * 4               # f32 intermediate h
                    + (2 * n_in * n_perc_p + n_perc_p + n_in) * itemsize)
    use_grid = force_grid or (single_bytes > _VMEM_BUDGET)

    cost = pl.CostEstimate(
        flops=4 * b_pad * n_in * n_perc_p,               # two matmuls, 2*M*N*K each
        transcendentals=0,
        bytes_accessed=(2 * b_pad * n_in
                        + 2 * n_in * n_perc_p + n_perc_p + n_in) * itemsize,
    )

    out_shape = jax.ShapeDtypeStruct((b_pad, n_in), x.dtype)

    if not use_grid:
        # Single invocation: every operand is a plain full-array VMEM ref
        # (no grid, no pipelining prologue/epilogue, no double buffering).
        vmem_spec = pl.BlockSpec(memory_space=pltpu.MemorySpace.VMEM)
        out = pl.pallas_call(
            _mlp_kernel,
            out_shape=out_shape,
            in_specs=[vmem_spec] * 5,
            out_specs=vmem_spec,
            compiler_params=pltpu.CompilerParams(
                vmem_limit_bytes=_VMEM_BUDGET),
            cost_estimate=cost,
        )(xp, w1p, b1p, w2p, b2p)
    else:
        # Batch-tiled grid: weights/biases stay resident across the grid (same
        # block index each step). Partial edge block handles b_pad % tb != 0,
        # so at most 7 padded rows are ever processed. "parallel" lets v7x's
        # two TensorCores split the tiles; harmless on v5e/v6e.
        tb = min(block_b, b_pad)
        grid = (pl.cdiv(b_pad, tb),)
        out = pl.pallas_call(
            _mlp_kernel,
            out_shape=out_shape,
            grid=grid,
            in_specs=[
                pl.BlockSpec((tb, n_in), lambda i: (i, 0)),            # x tile
                pl.BlockSpec((n_in, n_perc_p), lambda i: (0, 0)),      # W1 resident
                pl.BlockSpec((1, n_perc_p), lambda i: (0, 0)),         # b1 resident
                pl.BlockSpec((n_perc_p, n_in), lambda i: (0, 0)),      # W2 resident
                pl.BlockSpec((1, n_in), lambda i: (0, 0)),             # b2 resident
            ],
            out_specs=pl.BlockSpec((tb, n_in), lambda i: (i, 0)),
            compiler_params=pltpu.CompilerParams(
                dimension_semantics=("parallel",),
                vmem_limit_bytes=_VMEM_BUDGET),
            cost_estimate=cost,
        )(xp, w1p, b1p, w2p, b2p)

    # Drop the (at most 7) zero-padded batch rows; columns are already logical.
    return out[:B] if b_pad != B else out


def init_params(key, num_inputs, num_perceptrons, dtype=jnp.float32):
    """Deterministic init mimicking torch.nn.Linear's uniform(-1/sqrt(fan_in), ...)."""
    k1, k2, k3, k4 = jax.random.split(key, 4)
    bound1 = 1.0 / jnp.sqrt(num_inputs)
    bound2 = 1.0 / jnp.sqrt(num_perceptrons)
    w1 = jax.random.uniform(k1, (num_inputs, num_perceptrons), dtype, -bound1, bound1)
    b1 = jax.random.uniform(k2, (1, num_perceptrons), dtype, -bound1, bound1)
    w2 = jax.random.uniform(k3, (num_perceptrons, num_inputs), dtype, -bound2, bound2)
    b2 = jax.random.uniform(k4, (1, num_inputs), dtype, -bound2, bound2)
    return w1, b1, w2, b2


if __name__ == "__main__":
    num_inputs = 32
    num_perceptrons = 64
    batch = 8

    key = jax.random.PRNGKey(0)
    kx, kp, kx2 = jax.random.split(key, 3)
    w1, b1, w2, b2 = init_params(kp, num_inputs, num_perceptrons)

    # One-time padded params (hoisted out of the forward hot path).
    params = prepare_params(w1, b1, w2, b2)

    def ref_fn(xx):
        return jnp.maximum(xx @ w1 + b1, 0.0) @ w2 + b2

    # --- small case: single-block, no-grid path -------------------------------
    x = jax.random.normal(kx, (batch, num_inputs), jnp.float32)
    dataV = jax.block_until_ready(net_forward(x, *params))
    assert dataV.shape == (batch, num_inputs)
    assert jnp.allclose(dataV, ref_fn(x), atol=1e-5, rtol=1e-5)

    # --- grid path exercised explicitly (resident weights, batch-tiled) -------
    big_batch = 384
    xb = jax.random.normal(kx2, (big_batch, num_inputs), jnp.float32)
    dataV_big = jax.block_until_ready(
        net_forward(xb, *params, block_b=128, force_grid=True))
    assert dataV_big.shape == (big_batch, num_inputs)
    assert jnp.allclose(dataV_big, ref_fn(xb), atol=1e-4, rtol=1e-4)

    print("KERNEL_OK")
</pallas_src>

<mosaic_0001>
module attributes {stable_mosaic.version = 11 : i64} {
  func.func @_mlp_kernel(%arg0: memref<8x32xf32, #tpu.memory_space<vmem>>, %arg1: memref<32x128xf32, #tpu.memory_space<vmem>>, %arg2: memref<1x128xf32, #tpu.memory_space<vmem>>, %arg3: memref<128x32xf32, #tpu.memory_space<vmem>>, %arg4: memref<1x32xf32, #tpu.memory_space<vmem>>, %arg5: memref<8x32xf32, #tpu.memory_space<vmem>>) attributes {dimension_semantics = [], scalar_prefetch = 0 : i64, scratch_operands = 0 : i64, tpu.core_type = #tpu.core_type<tc>} {
    %c0 = arith.constant 0 : index
    %c0_0 = arith.constant 0 : index
    %0 = vector.load %arg0[%c0, %c0_0] : memref<8x32xf32, #tpu.memory_space<vmem>>, vector<8x32xf32>
    %c0_1 = arith.constant 0 : index
    %c0_2 = arith.constant 0 : index
    %1 = vector.load %arg1[%c0_1, %c0_2] : memref<32x128xf32, #tpu.memory_space<vmem>>, vector<32x128xf32>
    %cst = arith.constant dense<0.000000e+00> : vector<8x128xf32>
    %2 = tpu.matmul %0, %1, %cst {dimension_numbers = #tpu.dot_dimension_numbers<[1], [0], [0], [1], [0, 0, 1, 1], [], []>} : vector<8x32xf32>, vector<32x128xf32>, vector<8x128xf32> -> vector<8x128xf32>
    %c0_3 = arith.constant 0 : index
    %c0_4 = arith.constant 0 : index
    %3 = vector.load %arg2[%c0_3, %c0_4] : memref<1x128xf32, #tpu.memory_space<vmem>>, vector<1x128xf32>
    %4 = vector.broadcast %3 : vector<1x128xf32> to vector<8x128xf32>
    %5 = arith.addf %2, %4 : vector<8x128xf32>
    %cst_5 = arith.constant 0.000000e+00 : f32
    %6 = vector.broadcast %cst_5 : f32 to vector<8x128xf32>
    %7 = arith.maximumf %5, %6 : vector<8x128xf32>
    %c0_6 = arith.constant 0 : index
    %c0_7 = arith.constant 0 : index
    %8 = vector.load %arg3[%c0_6, %c0_7] : memref<128x32xf32, #tpu.memory_space<vmem>>, vector<128x32xf32>
    %cst_8 = arith.constant dense<0.000000e+00> : vector<8x32xf32>
    %9 = tpu.matmul %7, %8, %cst_8 {dimension_numbers = #tpu.dot_dimension_numbers<[1], [0], [0], [1], [0, 0, 1, 1], [], []>} : vector<8x128xf32>, vector<128x32xf32>, vector<8x32xf32> -> vector<8x32xf32>
    %c0_9 = arith.constant 0 : index
    %c0_10 = arith.constant 0 : index
    %10 = vector.load %arg4[%c0_9, %c0_10] : memref<1x32xf32, #tpu.memory_space<vmem>>, vector<1x32xf32>
    %11 = vector.broadcast %10 : vector<1x32xf32> to vector<8x32xf32>
    %12 = arith.addf %9, %11 : vector<8x32xf32>
    %c0_11 = arith.constant 0 : index
    %c0_12 = arith.constant 0 : index
    %13 = vector.load %arg5[%c0_11, %c0_12] : memref<8x32xf32, #tpu.memory_space<vmem>>, vector<8x32xf32>
    tpu.vector_store %arg5[%c0_11, %c0_12], %12 {strides = array<i32>} : memref<8x32xf32, #tpu.memory_space<vmem>>, vector<8x32xf32>,
    return
  }
}

</mosaic_0001>

<llo_original>
// kernel: net_forward.1
$region0: #{net_forward.1}
  #allocation0 [shape = 'u32[]', space=smem, size = 0x4, offset = 0x4, fixed_abs, tag = 'smem constant byte address 0x4 - core index']
  #allocation1 [shape = 'u32[144,128]{1,0:T(1,128)}', space=vmem, size = 0x12000, scoped, tag = 'internal scratch']
  %s0 = inlined_call_operand.vmem [shape: f32[8,32], index: 0, kind: input, shape index: {}]
  %s1 = inlined_call_operand.vmem [shape: f32[32,128], index: 1, kind: input, shape index: {}]
  %s2 = inlined_call_operand.vmem [shape: f32[1,128], index: 2, kind: input, shape index: {}]
  %s3 = inlined_call_operand.vmem [shape: f32[128,32], index: 3, kind: input, shape index: {}]
  %s4 = inlined_call_operand.vmem [shape: f32[1,32], index: 4, kind: input, shape index: {}]
  %s5 = inlined_call_operand.hbm [shape: f32[8,32], index: 5, kind: output, shape index: {}]
  %s6 = sld [smem:[#allocation0]]
  $region30: #{net_forward.1} parent=0
    _
  %s8 = ssub.s32 1, %s6
  %s9 = scalar_select 0, %s8, %s6
  $region1: #{net_forward.1} parent=0
    #allocation2 [shape = 'u8[4096]{0}', space=vmem, size = 0x1000, scoped, tag = 'output window, operand 0, single buffered']
    #allocation3 [shape = 's32[1]{0}', space=sflag, size = 0x4, scoped, tag = 'scoped memory for net_forward.1']
    %10 = vsyncpa [#allocation3], 0
    // Predicated region
    $region2: #{net_forward.1} parent=1 // pred_check
      _
    $region3: #{net_forward.1} parent=1 // pred_check_branch
      %12 = sbr.rel (0) target = $region5
    $region4: #{net_forward.1} parent=1 // pred_region
      _
    $region5: #{net_forward.1} parent=1 // pred_fallthru
      _
    // Predicated region
    $region6: #{net_forward.1} parent=1 // pred_check
      _
    $region7: #{net_forward.1} parent=1 // pred_check_branch
      %14 = sbr.rel (0) target = $region9
    $region8: #{net_forward.1} parent=1 // pred_region
      _
    $region9: #{net_forward.1} parent=1 // pred_fallthru
      _
    // Predicated region
    $region10: #{net_forward.1} parent=1 // pred_check
      _
    $region11: #{net_forward.1} parent=1 // pred_check_branch
      %16 = sbr.rel (0) target = $region13
    $region12: #{net_forward.1} parent=1 // pred_region
      _
    $region13: #{net_forward.1} parent=1 // pred_fallthru
      _
    // Predicated region
    $region14: #{net_forward.1} parent=1 // pred_check
      _
    $region15: #{net_forward.1} parent=1 // pred_check_branch
      %18 = sbr.rel (0) target = $region17
    $region16: #{net_forward.1} parent=1 // pred_region
      _
    $region17: #{net_forward.1} parent=1 // pred_fallthru
      _
    // Predicated region
    $region18: #{net_forward.1} parent=1 // pred_check
      _
    $region19: #{net_forward.1} parent=1 // pred_check_branch
      %20 = sbr.rel (0) target = $region21
    $region20: #{net_forward.1} parent=1 // pred_region
      _
    $region21: #{net_forward.1} parent=1 // pred_fallthru
      _
    %v21 = vld [vmem:[%s0] sm:$0xff]
    %v22 = vld [vmem:[%s1] sm:$0xff]
    %v23 = vld [vmem:[%s1 + $0x8] sm:$0xff]
    %v24 = vld [vmem:[%s1 + $0x10] sm:$0xff]
    %v25 = vld [vmem:[%s1 + $0x18] sm:$0xff]
    %v26 = vld [vmem:[%s2] sm:$0x1]
    %v28 = vlaneseq
    %v29 = vshrl.u32 %v28, 7
    %v30 = vsub.s32 0, %v29
    %v31 = vrot.slane %v26, %v30
    %vm33 = vcmask 261120
    %v35 = vsel %vm33, %v21, 0
    %37 = vmatprep.subr.mxu0 0.0
    %38 = vmatpush1.msra.mxu0 %v22
    %39 = vmatprep.subr.mxu0 0.0
    %40 = vmatpush1.msra.mxu0 %v23
    %41 = vmatprep.subr.mxu0 0.0
    %42 = vmatpush1.msra.mxu0 %v24
    %43 = vmatprep.subr.mxu0 0.0
    %44 = vmatpush1.msra.mxu0 %v25
    %45 = vmatprep.subr.mxu0 0.0
    %46 = vmatpush1.msra.mxu0 0.0
    %47 = vmatprep.subr.mxu0 0.0
    %48 = vmatpush1.msra.mxu0 0.0
    %49 = vmatprep.subr.mxu0 0.0
    %50 = vmatpush1.msra.mxu0 0.0
    %51 = vmatprep.subr.mxu0 0.0
    %52 = vmatpush1.msra.mxu0 0.0
    %53 = vmatprep.subr.mxu0 0.0
    %54 = vmatpush1.msra.mxu0 0.0
    %55 = vmatprep.subr.mxu0 0.0
    %56 = vmatpush1.msra.mxu0 0.0
    %57 = vmatprep.subr.mxu0 0.0
    %58 = vmatpush1.msra.mxu0 0.0
    %59 = vmatprep.subr.mxu0 0.0
    %60 = vmatpush1.msra.mxu0 0.0
    %61 = vmatprep.subr.mxu0 0.0
    %62 = vmatpush1.msra.mxu0 0.0
    %63 = vmatprep.subr.mxu0 0.0
    %64 = vmatpush1.msra.mxu0 0.0
    %65 = vmatprep.subr.mxu0 0.0
    %66 = vmatpush1.msra.mxu0 0.0
    %67 = vmatprep.subr.mxu0 0.0
    %68 = vmatpush1.msra.mxu0 0.0
    %69 = vmatprep.subr.mxu0 0.0
    %70 = vmatpush1.msra.mxu0 0.0
    %71 = vmatprep.subr.mxu0 0.0
    %72 = vmatpush1.msra.mxu0 0.0
    %73 = vmatprep.subr.mxu0 0.0
    %74 = vmatpush1.msra.mxu0 0.0
    %75 = vmatprep.subr.mxu0 0.0
    %76 = vmatpush1.msra.mxu0 0.0
    %77 = vmatprep.subr.mxu0 0.0
    %78 = vmatpush1.msra.mxu0 0.0
    %79 = vmatprep.subr.mxu0 0.0
    %80 = vmatpush1.msra.mxu0 0.0
    %81 = vmatprep.subr.mxu0 0.0
    %82 = vmatpush1.msra.mxu0 0.0
    %83 = vmatprep.subr.mxu0 0.0
    %84 = vmatpush1.msra.mxu0 0.0
    %85 = vmatprep.subr.mxu0 0.0
    %86 = vmatpush1.msra.mxu0 0.0
    %87 = vmatprep.subr.mxu0 0.0
    %88 = vmatpush1.msra.mxu0 0.0
    %89 = vmatprep.subr.mxu0 0.0
    %90 = vmatpush1.msra.mxu0 0.0
    %91 = vmatprep.subr.mxu0 0.0
    %92 = vmatpush1.msra.mxu0 0.0
    %93 = vmatprep.subr.mxu0 0.0
    %94 = vmatpush1.msra.mxu0 0.0
    %95 = vmatprep.subr.mxu0 0.0
    %96 = vmatpush1.msra.mxu0 0.0
    %97 = vmatprep.subr.mxu0 0.0
    %98 = vmatpush1.msra.mxu0 0.0
    %99 = vmatprep.subr.mxu0 0.0
    %100 = vmatpush1.msra.mxu0 0.0
    %101 = vmatprep.mubr.f32.mxu0 0.0
    %102 = vmatmul.mubr.f32.gmra.mrb[0].mxu0 %v35
    %v103 = vpop.f32.mrb[0].mxu0
    %v104 = vadd.f32 %v31, %v103
    %v105 = vpop.f32.mrb[0].mxu0
    %106 = vdwg.mxu0
    %v107 = vmax.f32 %v104, 0.0
    %v108 = vld [vmem:[%s3] sm:$0xff]
    %v109 = vld [vmem:[%s3 + $0x8] sm:$0xff]
    %v110 = vld [vmem:[%s3 + $0x10] sm:$0xff]
    %v111 = vld [vmem:[%s3 + $0x18] sm:$0xff]
    %v112 = vld [vmem:[%s3 + $0x20] sm:$0xff]
    %v113 = vld [vmem:[%s3 + $0x28] sm:$0xff]
    %v114 = vld [vmem:[%s3 + $0x30] sm:$0xff]
    %v115 = vld [vmem:[%s3 + $0x38] sm:$0xff]
    %v116 = vld [vmem:[%s3 + $0x40] sm:$0xff]
    %v117 = vld [vmem:[%s3 + $0x48] sm:$0xff]
    %v118 = vld [vmem:[%s3 + $0x50] sm:$0xff]
    %v119 = vld [vmem:[%s3 + $0x58] sm:$0xff]
    %v120 = vld [vmem:[%s3 + $0x60] sm:$0xff]
    %v121 = vld [vmem:[%s3 + $0x68] sm:$0xff]
    %v122 = vld [vmem:[%s3 + $0x70] sm:$0xff]
    %v123 = vld [vmem:[%s3 + $0x78] sm:$0xff]
    %v124 = vld [vmem:[%s4] sm:$0x1]
    %v126 = vlaneseq
    %v127 = vshrl.u32 %v126, 7
    %v128 = vsub.s32 0, %v127
    %v129 = vrot.slane %v124, %v128
    %131 = vmatprep.subr.mxu0 0.0
    %132 = vmatpush1.msra.mxu0 %v108
    %133 = vmatprep.subr.mxu0 0.0
    %134 = vmatpush1.msra.mxu0 %v109
    %135 = vmatprep.subr.mxu0 0.0
    %136 = vmatpush1.msra.mxu0 %v110
    %137 = vmatprep.subr.mxu0 0.0
    %138 = vmatpush1.msra.mxu0 %v111
    %139 = vmatprep.subr.mxu0 0.0
    %140 = vmatpush1.msra.mxu0 %v112
    %141 = vmatprep.subr.mxu0 0.0
    %142 = vmatpush1.msra.mxu0 %v113
    %143 = vmatprep.subr.mxu0 0.0
    %144 = vmatpush1.msra.mxu0 %v114
    %145 = vmatprep.subr.mxu0 0.0
    %146 = vmatpush1.msra.mxu0 %v115
    %147 = vmatprep.subr.mxu0 0.0
    %148 = vmatpush1.msra.mxu0 %v116
    %149 = vmatprep.subr.mxu0 0.0
    %150 = vmatpush1.msra.mxu0 %v117
    %151 = vmatprep.subr.mxu0 0.0
    %152 = vmatpush1.msra.mxu0 %v118
    %153 = vmatprep.subr.mxu0 0.0
    %154 = vmatpush1.msra.mxu0 %v119
    %155 = vmatprep.subr.mxu0 0.0
    %156 = vmatpush1.msra.mxu0 %v120
    %157 = vmatprep.subr.mxu0 0.0
    %158 = vmatpush1.msra.mxu0 %v121
    %159 = vmatprep.subr.mxu0 0.0
    %160 = vmatpush1.msra.mxu0 %v122
    %161 = vmatprep.subr.mxu0 0.0
    %162 = vmatpush1.msra.mxu0 %v123
    %163 = vmatprep.subr.mxu0 0.0
    %164 = vmatpush1.msra.mxu0 0.0
    %165 = vmatprep.subr.mxu0 0.0
    %166 = vmatpush1.msra.mxu0 0.0
    %167 = vmatprep.subr.mxu0 0.0
    %168 = vmatpush1.msra.mxu0 0.0
    %169 = vmatprep.subr.mxu0 0.0
    %170 = vmatpush1.msra.mxu0 0.0
    %171 = vmatprep.subr.mxu0 0.0
    %172 = vmatpush1.msra.mxu0 0.0
    %173 = vmatprep.subr.mxu0 0.0
    %174 = vmatpush1.msra.mxu0 0.0
    %175 = vmatprep.subr.mxu0 0.0
    %176 = vmatpush1.msra.mxu0 0.0
    %177 = vmatprep.subr.mxu0 0.0
    %178 = vmatpush1.msra.mxu0 0.0
    %179 = vmatprep.subr.mxu0 0.0
    %180 = vmatpush1.msra.mxu0 0.0
    %181 = vmatprep.subr.mxu0 0.0
    %182 = vmatpush1.msra.mxu0 0.0
    %183 = vmatprep.subr.mxu0 0.0
    %184 = vmatpush1.msra.mxu0 0.0
    %185 = vmatprep.subr.mxu0 0.0
    %186 = vmatpush1.msra.mxu0 0.0
    %187 = vmatprep.subr.mxu0 0.0
    %188 = vmatpush1.msra.mxu0 0.0
    %189 = vmatprep.subr.mxu0 0.0
    %190 = vmatpush1.msra.mxu0 0.0
    %191 = vmatprep.subr.mxu0 0.0
    %192 = vmatpush1.msra.mxu0 0.0
    %193 = vmatprep.subr.mxu0 0.0
    %194 = vmatpush1.msra.mxu0 0.0
    %195 = vmatprep.mubr.f32.mxu0 0.0
    %196 = vmatmul.mubr.f32.gmra.mrb[0].mxu0 %v107
    %v197 = vpop.f32.mrb[0].mxu0
    %v198 = vadd.f32 %v129, %v197
    %v199 = vpop.f32.mrb[0].mxu0
    %200 = vdwg.mxu0
    %201 = vst.msk [vmem:[#allocation2] sm:$0xff] %vm33, %v198
    // Predicated region
    $region22: #{net_forward.1} parent=1 // pred_check
      _
    $region23: #{net_forward.1} parent=1 // pred_check_branch
      %203 = sbr.rel (0) target = $region25
    $region24: #{net_forward.1} parent=1 // pred_region
      %s205 = ssub.s32 128, 128
      %206 = vsyncadd [#allocation3], %s205
      %s208 = sshll.u32 [#allocation2], 4
      %s209 = int_to_ptr.vmem [resolvable:$true] %s208
      %211 = dma.vmem_to_hbm [thread:$0]  %s209, 128, %s5, [#allocation3]
    $region25: #{net_forward.1} parent=1 // pred_fallthru
      _
    // Predicated region
    $region26: #{net_forward.1} parent=1 // pred_check
      _
    $region27: #{net_forward.1} parent=1 // pred_check_branch
      %213 = sbr.rel (0) target = $region29
    $region28: #{net_forward.1} parent=1 // pred_region
      %214 = dma.done [#allocation3], 128
    $region29: #{net_forward.1} parent=1 // pred_fallthru
      _
    %215 = vsyncpa [#allocation3], 1

</llo_original>
